<compile_context>
chip_gen: v7x
topology: tpu7x:2x2x1
jax: 0.10.0
libtpu: 0.0.40
codegen_flags: <defaults>
</compile_context>

<pallas_src>
import functools

import jax
import jax.numpy as jnp
from jax.experimental import pallas as pl
from jax.experimental.pallas import tpu as pltpu


H_PAD = 128   # padded hidden / embedding / output width (lane-dense)
B_PAD = 8     # padded batch (full sublane tile)

_VMEM = pl.BlockSpec(memory_space=pltpu.MemorySpace.VMEM)


# ------------------------------ fused kernel ------------------------------- #

def decoder_kernel(ids_ref, emb_ref, w_ref, b_ref, wfc_ref, bfc_ref,
                   h0_ref, c0_ref, pred_ref, hn_ref, cn_ref):
    """Embedding gather + num_layers LSTM cells (seq_len == 1) + Linear, fused."""
    B = ids_ref.shape[0]          # padded batch
    V = emb_ref.shape[0]          # vocab
    L = w_ref.shape[0]            # num layers (static)

    # ---- embedding lookup as one-hot matmul (vectorized gather) ----
    ids = ids_ref[...]                                                # (B, 1) int32
    pos = jax.lax.broadcasted_iota(jnp.int32, (B, V), 1)              # (B, V)
    onehot = (pos == ids).astype(jnp.float32)                         # (B, V)
    x = jnp.dot(onehot, emb_ref[...],
                preferred_element_type=jnp.float32)                   # (B, H_PAD)

    # ---- stacked LSTM layers (static unrolled loop; state stays on-chip) ----
    for l in range(L):
        h_prev = h0_ref[l]                                            # (B, H_PAD)
        c_prev = c0_ref[l]                                            # (B, H_PAD)

        x_cat = jnp.concatenate([x, h_prev], axis=1)                  # (B, 2*H_PAD)
        gates = (jnp.dot(x_cat, w_ref[l],
                         preferred_element_type=jnp.float32)
                 + b_ref[l])                                          # (B, 4*H_PAD)

        # PyTorch gate order i, f, g, o — each gate is one lane-aligned 128 slab.
        i = jax.nn.sigmoid(gates[:, 0 * H_PAD:1 * H_PAD])
        f = jax.nn.sigmoid(gates[:, 1 * H_PAD:2 * H_PAD])
        g = jnp.tanh(gates[:, 2 * H_PAD:3 * H_PAD])
        o = jax.nn.sigmoid(gates[:, 3 * H_PAD:4 * H_PAD])

        c_new = f * c_prev + i * g
        h_new = o * jnp.tanh(c_new)

        hn_ref[l] = h_new
        cn_ref[l] = c_new
        x = h_new
        # TODO(synk): nn.LSTM inter-layer dropout (p=0.5) only applies in training
        # mode; at inference it is the identity, so it is intentionally omitted.

    # ---- final linear layer ----
    pred_ref[...] = (jnp.dot(x, wfc_ref[...],
                             preferred_element_type=jnp.float32)
                     + bfc_ref[...])


# ------------------------------ model wrapper ------------------------------ #

def init_params(key, vocab, emb_dim, hidden, num_layers, out_dim):
    """Logical (unpadded) parameters, PyTorch-style init / layout."""
    k_emb, k_lstm, k_fc = jax.random.split(key, 3)
    params = {"embedding": jax.random.normal(k_emb, (vocab, emb_dim), jnp.float32)}

    bound = 1.0 / jnp.sqrt(hidden)
    wih, whh, b = [], [], []
    lkeys = jax.random.split(k_lstm, num_layers * 4)
    for l in range(num_layers):
        in_dim = emb_dim if l == 0 else hidden
        k0, k1, k2, k3 = lkeys[4 * l: 4 * l + 4]
        wih.append(jax.random.uniform(k0, (4, in_dim, hidden), jnp.float32, -bound, bound))
        whh.append(jax.random.uniform(k1, (4, hidden, hidden), jnp.float32, -bound, bound))
        b_ih = jax.random.uniform(k2, (4, 1, hidden), jnp.float32, -bound, bound)
        b_hh = jax.random.uniform(k3, (4, 1, hidden), jnp.float32, -bound, bound)
        b.append(b_ih + b_hh)   # torch adds both biases
    params["wih"], params["whh"], params["b"] = wih, whh, b

    kf0, kf1 = jax.random.split(k_fc)
    fb = 1.0 / jnp.sqrt(hidden)
    params["w_fc"] = jax.random.uniform(kf0, (hidden, out_dim), jnp.float32, -fb, fb)
    params["b_fc"] = jax.random.uniform(kf1, (1, out_dim), jnp.float32, -fb, fb)
    return params


def pack_params(params, emb_dim, hidden, num_layers, out_dim):
    """Pack/pad parameters into the fused, lane-dense kernel layout (done once)."""
    H, L = hidden, num_layers
    vocab = params["embedding"].shape[0]

    emb_p = jnp.zeros((vocab, H_PAD), jnp.float32).at[:, :emb_dim].set(params["embedding"])

    # Per layer: one (2*H_PAD, 4*H_PAD) weight; rows [0:H_PAD) take the x part,
    # rows [H_PAD:2*H_PAD) take the h part; gate k lives in cols [k*H_PAD, k*H_PAD+H).
    w_p = jnp.zeros((L, 2 * H_PAD, 4 * H_PAD), jnp.float32)
    b_p = jnp.zeros((L, 1, 4 * H_PAD), jnp.float32)
    for l in range(L):
        in_dim = emb_dim if l == 0 else H
        for k in range(4):
            c0_, c1_ = k * H_PAD, k * H_PAD + H
            w_p = w_p.at[l, 0:in_dim, c0_:c1_].set(params["wih"][l][k])
            w_p = w_p.at[l, H_PAD:H_PAD + H, c0_:c1_].set(params["whh"][l][k])
            b_p = b_p.at[l, 0, c0_:c1_].set(params["b"][l][k, 0])

    wfc_p = jnp.zeros((H_PAD, H_PAD), jnp.float32).at[:H, :out_dim].set(params["w_fc"])
    bfc_p = jnp.zeros((1, H_PAD), jnp.float32).at[:, :out_dim].set(params["b_fc"])

    return {"emb": emb_p, "w": w_p, "b": b_p, "wfc": wfc_p, "bfc": bfc_p}


@functools.partial(jax.jit, static_argnames=("out_dim",))
def decoder_forward(packed, x_tokens, h0, c0, *, out_dim):
    """Mirrors Decoder.forward: x (B,) int -> (predictions (B,O), h_n, c_n)."""
    L, B, H = h0.shape

    # Zero-pad dynamic inputs (padded lanes MUST be zero so padded state stays zero).
    ids_p = jnp.zeros((B_PAD, 1), jnp.int32).at[:B, 0].set(x_tokens.astype(jnp.int32))
    h0_p = jnp.zeros((L, B_PAD, H_PAD), jnp.float32).at[:, :B, :H].set(h0)
    c0_p = jnp.zeros((L, B_PAD, H_PAD), jnp.float32).at[:, :B, :H].set(c0)

    V = packed["emb"].shape[0]
    flops = (2 * B_PAD * V * H_PAD                          # embedding one-hot matmul
             + L * 2 * B_PAD * (2 * H_PAD) * (4 * H_PAD)    # fused gate matmuls
             + 2 * B_PAD * H_PAD * H_PAD)                   # final linear
    transcendentals = L * B_PAD * 5 * H_PAD                 # 3 sigmoid + 2 tanh per elem
    bytes_accessed = int(sum(a.size * a.dtype.itemsize for a in
                             (ids_p, packed["emb"], packed["w"], packed["b"],
                              packed["wfc"], packed["bfc"], h0_p, c0_p))
                         + (B_PAD * H_PAD + 2 * L * B_PAD * H_PAD) * 4)

    pred_p, hn_p, cn_p = pl.pallas_call(
        decoder_kernel,
        out_shape=(jax.ShapeDtypeStruct((B_PAD, H_PAD), jnp.float32),
                   jax.ShapeDtypeStruct((L, B_PAD, H_PAD), jnp.float32),
                   jax.ShapeDtypeStruct((L, B_PAD, H_PAD), jnp.float32)),
        in_specs=[_VMEM] * 8,
        out_specs=(_VMEM, _VMEM, _VMEM),
        cost_estimate=pl.CostEstimate(flops=int(flops),
                                      transcendentals=int(transcendentals),
                                      bytes_accessed=bytes_accessed),
    )(ids_p, packed["emb"], packed["w"], packed["b"],
      packed["wfc"], packed["bfc"], h0_p, c0_p)

    return (pred_p[:B, :out_dim],
            hn_p[:, :B, :H],
            cn_p[:, :B, :H])


# Pure-JAX reference (unpadded, per-gate) for the sanity check.
def ref_forward(params, x_tokens, h0, c0):
    emb = params["embedding"][x_tokens]
    inp = emb
    hs, cs = [], []
    for l in range(len(params["wih"])):
        wih, whh, b = params["wih"][l], params["whh"][l], params["b"][l]
        gates = [inp @ wih[k] + h0[l] @ whh[k] + b[k] for k in range(4)]
        i, f = jax.nn.sigmoid(gates[0]), jax.nn.sigmoid(gates[1])
        g, o = jnp.tanh(gates[2]), jax.nn.sigmoid(gates[3])
        c_new = f * c0[l] + i * g
        h_new = o * jnp.tanh(c_new)
        hs.append(h_new)
        cs.append(c_new)
        inp = h_new
    pred = inp @ params["w_fc"] + params["b_fc"]
    return pred, jnp.stack(hs), jnp.stack(cs)


if __name__ == "__main__":
    vocab       = 16   # sequenec_size (num_embeddings)
    emb_dim     = 8
    hidden      = 16
    num_layers  = 2
    out_dim     = 16   # output_size
    batch       = 4

    key = jax.random.PRNGKey(0)
    k_params, k_x, k_h, k_c = jax.random.split(key, 4)

    params = init_params(k_params, vocab, emb_dim, hidden, num_layers, out_dim)
    packed = pack_params(params, emb_dim, hidden, num_layers, out_dim)

    x  = jax.random.randint(k_x, (batch,), 0, vocab, dtype=jnp.int32)   # token ids
    h0 = jax.random.normal(k_h, (num_layers, batch, hidden), jnp.float32)
    c0 = jax.random.normal(k_c, (num_layers, batch, hidden), jnp.float32)

    pred, h_n, c_n = decoder_forward(packed, x, h0, c0, out_dim=out_dim)
    jax.block_until_ready((pred, h_n, c_n))

    # correctness check vs. pure-JAX reference
    pred_r, h_r, c_r = ref_forward(params, x, h0, c0)
    assert pred.shape == (batch, out_dim)
    assert h_n.shape == (num_layers, batch, hidden)
    assert c_n.shape == (num_layers, batch, hidden)
    assert jnp.allclose(pred, pred_r, atol=1e-4)
    assert jnp.allclose(h_n, h_r, atol=1e-4)
    assert jnp.allclose(c_n, c_r, atol=1e-4)

    print("KERNEL_OK")
</pallas_src>

<mosaic_0001>
module attributes {stable_mosaic.version = 11 : i64} {
  func.func @decoder_kernel(%arg0: memref<8x1xi32, #tpu.memory_space<vmem>>, %arg1: memref<16x128xf32, #tpu.memory_space<vmem>>, %arg2: memref<2x256x512xf32, #tpu.memory_space<vmem>>, %arg3: memref<2x1x512xf32, #tpu.memory_space<vmem>>, %arg4: memref<128x128xf32, #tpu.memory_space<vmem>>, %arg5: memref<1x128xf32, #tpu.memory_space<vmem>>, %arg6: memref<2x8x128xf32, #tpu.memory_space<vmem>>, %arg7: memref<2x8x128xf32, #tpu.memory_space<vmem>>, %arg8: memref<8x128xf32, #tpu.memory_space<vmem>>, %arg9: memref<2x8x128xf32, #tpu.memory_space<vmem>>, %arg10: memref<2x8x128xf32, #tpu.memory_space<vmem>>) attributes {dimension_semantics = [], scalar_prefetch = 0 : i64, scratch_operands = 0 : i64, tpu.core_type = #tpu.core_type<tc>} {
    %c0 = arith.constant 0 : index
    %c0_0 = arith.constant 0 : index
    %0 = vector.load %arg0[%c0, %c0_0] : memref<8x1xi32, #tpu.memory_space<vmem>>, vector<8x1xi32>
    %1 = tpu.iota {dimensions = array<i32: 1>} : vector<8x16xi32>
    %2 = vector.broadcast %0 : vector<8x1xi32> to vector<8x16xi32>
    %3 = arith.cmpi eq, %1, %2 : vector<8x16xi32>
    %4 = arith.extui %3 : vector<8x16xi1> to vector<8x16xi32>
    %5 = arith.sitofp %4 : vector<8x16xi32> to vector<8x16xf32>
    %c0_1 = arith.constant 0 : index
    %c0_2 = arith.constant 0 : index
    %6 = vector.load %arg1[%c0_1, %c0_2] : memref<16x128xf32, #tpu.memory_space<vmem>>, vector<16x128xf32>
    %cst = arith.constant dense<0.000000e+00> : vector<8x128xf32>
    %7 = tpu.matmul %5, %6, %cst {dimension_numbers = #tpu.dot_dimension_numbers<[1], [0], [0], [1], [0, 0, 1, 1], [], []>} : vector<8x16xf32>, vector<16x128xf32>, vector<8x128xf32> -> vector<8x128xf32>
    %c0_3 = arith.constant 0 : index
    %c0_4 = arith.constant 0 : index
    %c0_5 = arith.constant 0 : index
    %8 = vector.load %arg6[%c0_3, %c0_4, %c0_5] : memref<2x8x128xf32, #tpu.memory_space<vmem>>, vector<1x8x128xf32>
    %9 = vector.shape_cast %8 : vector<1x8x128xf32> to vector<8x128xf32>
    %c0_6 = arith.constant 0 : index
    %c0_7 = arith.constant 0 : index
    %c0_8 = arith.constant 0 : index
    %10 = vector.load %arg7[%c0_6, %c0_7, %c0_8] : memref<2x8x128xf32, #tpu.memory_space<vmem>>, vector<1x8x128xf32>
    %11 = vector.shape_cast %10 : vector<1x8x128xf32> to vector<8x128xf32>
    %12 = tpu.concatenate %7, %9 in 1 : vector<8x128xf32>, vector<8x128xf32> -> vector<8x256xf32>
    %c0_9 = arith.constant 0 : index
    %c0_10 = arith.constant 0 : index
    %c0_11 = arith.constant 0 : index
    %13 = vector.load %arg2[%c0_9, %c0_10, %c0_11] : memref<2x256x512xf32, #tpu.memory_space<vmem>>, vector<1x256x512xf32>
    %14 = vector.shape_cast %13 : vector<1x256x512xf32> to vector<256x512xf32>
    %cst_12 = arith.constant dense<0.000000e+00> : vector<8x512xf32>
    %15 = tpu.matmul %12, %14, %cst_12 {dimension_numbers = #tpu.dot_dimension_numbers<[1], [0], [0], [1], [0, 0, 1, 1], [], []>} : vector<8x256xf32>, vector<256x512xf32>, vector<8x512xf32> -> vector<8x512xf32>
    %c0_13 = arith.constant 0 : index
    %c0_14 = arith.constant 0 : index
    %c0_15 = arith.constant 0 : index
    %16 = vector.load %arg3[%c0_13, %c0_14, %c0_15] : memref<2x1x512xf32, #tpu.memory_space<vmem>>, vector<1x1x512xf32>
    %17 = vector.shape_cast %16 : vector<1x1x512xf32> to vector<1x512xf32>
    %18 = vector.broadcast %17 : vector<1x512xf32> to vector<8x512xf32>
    %19 = arith.addf %15, %18 : vector<8x512xf32>
    %20 = vector.extract_strided_slice %19 {offsets = [0, 0], sizes = [8, 128], strides = [1, 1]} : vector<8x512xf32> to vector<8x128xf32>
    %21 = arith.negf %20 : vector<8x128xf32>
    %22 = math.exp %21 : vector<8x128xf32>
    %cst_16 = arith.constant 1.000000e+00 : f32
    %23 = vector.broadcast %cst_16 : f32 to vector<8x128xf32>
    %24 = arith.addf %23, %22 : vector<8x128xf32>
    %25 = arith.divf %23, %24 : vector<8x128xf32>
    %26 = vector.extract_strided_slice %19 {offsets = [0, 128], sizes = [8, 128], strides = [1, 1]} : vector<8x512xf32> to vector<8x128xf32>
    %27 = arith.negf %26 : vector<8x128xf32>
    %28 = math.exp %27 : vector<8x128xf32>
    %cst_17 = arith.constant 1.000000e+00 : f32
    %29 = vector.broadcast %cst_17 : f32 to vector<8x128xf32>
    %30 = arith.addf %29, %28 : vector<8x128xf32>
    %31 = arith.divf %29, %30 : vector<8x128xf32>
    %32 = vector.extract_strided_slice %19 {offsets = [0, 256], sizes = [8, 128], strides = [1, 1]} : vector<8x512xf32> to vector<8x128xf32>
    %33 = math.tanh %32 : vector<8x128xf32>
    %34 = vector.extract_strided_slice %19 {offsets = [0, 384], sizes = [8, 128], strides = [1, 1]} : vector<8x512xf32> to vector<8x128xf32>
    %35 = arith.negf %34 : vector<8x128xf32>
    %36 = math.exp %35 : vector<8x128xf32>
    %cst_18 = arith.constant 1.000000e+00 : f32
    %37 = vector.broadcast %cst_18 : f32 to vector<8x128xf32>
    %38 = arith.addf %37, %36 : vector<8x128xf32>
    %39 = arith.divf %37, %38 : vector<8x128xf32>
    %40 = arith.mulf %31, %11 : vector<8x128xf32>
    %41 = arith.mulf %25, %33 : vector<8x128xf32>
    %42 = arith.addf %40, %41 : vector<8x128xf32>
    %43 = math.tanh %42 : vector<8x128xf32>
    %44 = arith.mulf %39, %43 : vector<8x128xf32>
    %c0_19 = arith.constant 0 : index
    %c0_20 = arith.constant 0 : index
    %c0_21 = arith.constant 0 : index
    %45 = vector.load %arg9[%c0_19, %c0_20, %c0_21] : memref<2x8x128xf32, #tpu.memory_space<vmem>>, vector<1x8x128xf32>
    %46 = vector.shape_cast %45 : vector<1x8x128xf32> to vector<8x128xf32>
    %47 = vector.shape_cast %44 : vector<8x128xf32> to vector<1x8x128xf32>
    tpu.vector_store %arg9[%c0_19, %c0_20, %c0_21], %47 {strides = array<i32>} : memref<2x8x128xf32, #tpu.memory_space<vmem>>, vector<1x8x128xf32>,
    %c0_22 = arith.constant 0 : index
    %c0_23 = arith.constant 0 : index
    %c0_24 = arith.constant 0 : index
    %48 = vector.load %arg10[%c0_22, %c0_23, %c0_24] : memref<2x8x128xf32, #tpu.memory_space<vmem>>, vector<1x8x128xf32>
    %49 = vector.shape_cast %48 : vector<1x8x128xf32> to vector<8x128xf32>
    %50 = vector.shape_cast %42 : vector<8x128xf32> to vector<1x8x128xf32>
    tpu.vector_store %arg10[%c0_22, %c0_23, %c0_24], %50 {strides = array<i32>} : memref<2x8x128xf32, #tpu.memory_space<vmem>>, vector<1x8x128xf32>,
    %c1 = arith.constant 1 : index
    %c0_25 = arith.constant 0 : index
    %c0_26 = arith.constant 0 : index
    %51 = vector.load %arg6[%c1, %c0_25, %c0_26] : memref<2x8x128xf32, #tpu.memory_space<vmem>>, vector<1x8x128xf32>
    %52 = vector.shape_cast %51 : vector<1x8x128xf32> to vector<8x128xf32>
    %c1_27 = arith.constant 1 : index
    %c0_28 = arith.constant 0 : index
    %c0_29 = arith.constant 0 : index
    %53 = vector.load %arg7[%c1_27, %c0_28, %c0_29] : memref<2x8x128xf32, #tpu.memory_space<vmem>>, vector<1x8x128xf32>
    %54 = vector.shape_cast %53 : vector<1x8x128xf32> to vector<8x128xf32>
    %55 = tpu.concatenate %44, %52 in 1 : vector<8x128xf32>, vector<8x128xf32> -> vector<8x256xf32>
    %c1_30 = arith.constant 1 : index
    %c0_31 = arith.constant 0 : index
    %c0_32 = arith.constant 0 : index
    %56 = vector.load %arg2[%c1_30, %c0_31, %c0_32] : memref<2x256x512xf32, #tpu.memory_space<vmem>>, vector<1x256x512xf32>
    %57 = vector.shape_cast %56 : vector<1x256x512xf32> to vector<256x512xf32>
    %cst_33 = arith.constant dense<0.000000e+00> : vector<8x512xf32>
    %58 = tpu.matmul %55, %57, %cst_33 {dimension_numbers = #tpu.dot_dimension_numbers<[1], [0], [0], [1], [0, 0, 1, 1], [], []>} : vector<8x256xf32>, vector<256x512xf32>, vector<8x512xf32> -> vector<8x512xf32>
    %c1_34 = arith.constant 1 : index
    %c0_35 = arith.constant 0 : index
    %c0_36 = arith.constant 0 : index
    %59 = vector.load %arg3[%c1_34, %c0_35, %c0_36] : memref<2x1x512xf32, #tpu.memory_space<vmem>>, vector<1x1x512xf32>
    %60 = vector.shape_cast %59 : vector<1x1x512xf32> to vector<1x512xf32>
    %61 = vector.broadcast %60 : vector<1x512xf32> to vector<8x512xf32>
    %62 = arith.addf %58, %61 : vector<8x512xf32>
    %63 = vector.extract_strided_slice %62 {offsets = [0, 0], sizes = [8, 128], strides = [1, 1]} : vector<8x512xf32> to vector<8x128xf32>
    %64 = arith.negf %63 : vector<8x128xf32>
    %65 = math.exp %64 : vector<8x128xf32>
    %cst_37 = arith.constant 1.000000e+00 : f32
    %66 = vector.broadcast %cst_37 : f32 to vector<8x128xf32>
    %67 = arith.addf %66, %65 : vector<8x128xf32>
    %68 = arith.divf %66, %67 : vector<8x128xf32>
    %69 = vector.extract_strided_slice %62 {offsets = [0, 128], sizes = [8, 128], strides = [1, 1]} : vector<8x512xf32> to vector<8x128xf32>
    %70 = arith.negf %69 : vector<8x128xf32>
    %71 = math.exp %70 : vector<8x128xf32>
    %cst_38 = arith.constant 1.000000e+00 : f32
    %72 = vector.broadcast %cst_38 : f32 to vector<8x128xf32>
    %73 = arith.addf %72, %71 : vector<8x128xf32>
    %74 = arith.divf %72, %73 : vector<8x128xf32>
    %75 = vector.extract_strided_slice %62 {offsets = [0, 256], sizes = [8, 128], strides = [1, 1]} : vector<8x512xf32> to vector<8x128xf32>
    %76 = math.tanh %75 : vector<8x128xf32>
    %77 = vector.extract_strided_slice %62 {offsets = [0, 384], sizes = [8, 128], strides = [1, 1]} : vector<8x512xf32> to vector<8x128xf32>
    %78 = arith.negf %77 : vector<8x128xf32>
    %79 = math.exp %78 : vector<8x128xf32>
    %cst_39 = arith.constant 1.000000e+00 : f32
    %80 = vector.broadcast %cst_39 : f32 to vector<8x128xf32>
    %81 = arith.addf %80, %79 : vector<8x128xf32>
    %82 = arith.divf %80, %81 : vector<8x128xf32>
    %83 = arith.mulf %74, %54 : vector<8x128xf32>
    %84 = arith.mulf %68, %76 : vector<8x128xf32>
    %85 = arith.addf %83, %84 : vector<8x128xf32>
    %86 = math.tanh %85 : vector<8x128xf32>
    %87 = arith.mulf %82, %86 : vector<8x128xf32>
    %c1_40 = arith.constant 1 : index
    %c0_41 = arith.constant 0 : index
    %c0_42 = arith.constant 0 : index
    %88 = vector.load %arg9[%c1_40, %c0_41, %c0_42] : memref<2x8x128xf32, #tpu.memory_space<vmem>>, vector<1x8x128xf32>
    %89 = vector.shape_cast %88 : vector<1x8x128xf32> to vector<8x128xf32>
    %90 = vector.shape_cast %87 : vector<8x128xf32> to vector<1x8x128xf32>
    tpu.vector_store %arg9[%c1_40, %c0_41, %c0_42], %90 {strides = array<i32>} : memref<2x8x128xf32, #tpu.memory_space<vmem>>, vector<1x8x128xf32>,
    %c1_43 = arith.constant 1 : index
    %c0_44 = arith.constant 0 : index
    %c0_45 = arith.constant 0 : index
    %91 = vector.load %arg10[%c1_43, %c0_44, %c0_45] : memref<2x8x128xf32, #tpu.memory_space<vmem>>, vector<1x8x128xf32>
    %92 = vector.shape_cast %91 : vector<1x8x128xf32> to vector<8x128xf32>
    %93 = vector.shape_cast %85 : vector<8x128xf32> to vector<1x8x128xf32>
    tpu.vector_store %arg10[%c1_43, %c0_44, %c0_45], %93 {strides = array<i32>} : memref<2x8x128xf32, #tpu.memory_space<vmem>>, vector<1x8x128xf32>,
    %c0_46 = arith.constant 0 : index
    %c0_47 = arith.constant 0 : index
    %94 = vector.load %arg4[%c0_46, %c0_47] : memref<128x128xf32, #tpu.memory_space<vmem>>, vector<128x128xf32>
    %cst_48 = arith.constant dense<0.000000e+00> : vector<8x128xf32>
    %95 = tpu.matmul %87, %94, %cst_48 {dimension_numbers = #tpu.dot_dimension_numbers<[1], [0], [0], [1], [0, 0, 1, 1], [], []>} : vector<8x128xf32>, vector<128x128xf32>, vector<8x128xf32> -> vector<8x128xf32>
    %c0_49 = arith.constant 0 : index
    %c0_50 = arith.constant 0 : index
    %96 = vector.load %arg5[%c0_49, %c0_50] : memref<1x128xf32, #tpu.memory_space<vmem>>, vector<1x128xf32>
    %97 = vector.broadcast %96 : vector<1x128xf32> to vector<8x128xf32>
    %98 = arith.addf %95, %97 : vector<8x128xf32>
    %c0_51 = arith.constant 0 : index
    %c0_52 = arith.constant 0 : index
    %99 = vector.load %arg8[%c0_51, %c0_52] : memref<8x128xf32, #tpu.memory_space<vmem>>, vector<8x128xf32>
    tpu.vector_store %arg8[%c0_51, %c0_52], %98 {strides = array<i32>} : memref<8x128xf32, #tpu.memory_space<vmem>>, vector<8x128xf32>,
    return
  }
}

</mosaic_0001>

<llo_original>
// kernel: decoder_forward.1
$region0: #{decoder_forward.1}
  #allocation0 [shape = 'u32[]', space=smem, size = 0x4, offset = 0x4, fixed_abs, tag = 'smem constant byte address 0x4 - core index']
  #allocation1 [shape = 'u32[144,128]{1,0:T(1,128)}', space=vmem, size = 0x12000, scoped, tag = 'internal scratch']
  %s0 = inlined_call_operand.vmem [shape: s32[8,1], index: 0, kind: input, shape index: {}]
  %s1 = inlined_call_operand.vmem [shape: f32[16,128], index: 1, kind: input, shape index: {}]
  %s2 = inlined_call_operand.hbm [shape: f32[2,256,512], index: 2, kind: input, shape index: {}]
  %s3 = inlined_call_operand.vmem [shape: f32[2,1,512], index: 3, kind: input, shape index: {}]
  %s4 = inlined_call_operand.hbm [shape: f32[128,128], index: 4, kind: input, shape index: {}]
  %s5 = inlined_call_operand.vmem [shape: f32[1,128], index: 5, kind: input, shape index: {}]
  %s6 = inlined_call_operand.vmem [shape: f32[2,8,128], index: 6, kind: input, shape index: {}]
  %s7 = inlined_call_operand.vmem [shape: f32[2,8,128], index: 7, kind: input, shape index: {}]
  %s8 = inlined_call_operand.vmem [shape: f32[8,128], index: 8, kind: output, shape index: {0}]
  %s9 = inlined_call_operand.vmem [shape: f32[2,8,128], index: 9, kind: output, shape index: {1}]
  %s10 = inlined_call_operand.vmem [shape: f32[2,8,128], index: 10, kind: output, shape index: {2}]
  %11 = xla_tuple %s8, %s9, %s10
  %s12 = sld [smem:[#allocation0]]
  $region66: #{decoder_forward.1} parent=0
    _
  %s14 = ssub.s32 1, %s12
  %s15 = scalar_select 0, %s14, %s12
  $region1: #{decoder_forward.1} parent=0
    #allocation2 [shape = 'u8[1048576]{0}', space=vmem, size = 0x100000, scoped, tag = 'input window, operand 2, single buffered']
    #allocation3 [shape = 's32[1]{0}', space=sflag, size = 0x4, scoped, tag = 'scoped memory for decoder_forward.1']
    #allocation4 [shape = 'u8[65536]{0}', space=vmem, size = 0x10000, scoped, tag = 'input window, operand 4, single buffered']
    #allocation5 [shape = 's32[1]{0}', space=sflag, size = 0x4, scoped, tag = 'scoped memory for decoder_forward.1']
    %16 = vsyncpa [#allocation3], 0
    %17 = vsyncpa [#allocation5], 0
    // Predicated region
    $region2: #{decoder_forward.1} parent=1 // pred_check
      _
    $region3: #{decoder_forward.1} parent=1 // pred_check_branch
      %19 = sbr.rel (0) target = $region5
    $region4: #{decoder_forward.1} parent=1 // pred_region
      _
    $region5: #{decoder_forward.1} parent=1 // pred_fallthru
      _
    // Predicated region
    $region6: #{decoder_forward.1} parent=1 // pred_check
      _
    $region7: #{decoder_forward.1} parent=1 // pred_check_branch
      %21 = sbr.rel (0) target = $region9
    $region8: #{decoder_forward.1} parent=1 // pred_region
      _
    $region9: #{decoder_forward.1} parent=1 // pred_fallthru
      _
    // Predicated region
    $region10: #{decoder_forward.1} parent=1 // pred_check
      _
    $region11: #{decoder_forward.1} parent=1 // pred_check_branch
      %23 = sbr.rel (0) target = $region13
    $region12: #{decoder_forward.1} parent=1 // pred_region
      %s25 = ssub.s32 32768, 32768
      %26 = vsyncadd [#allocation3], %s25
      %s27 = sshll.u32 [#allocation2], 4
      %s28 = int_to_ptr.vmem [resolvable:$true] %s27
      %33 = dma.hbm_to_vmem [thread:$0]  %s2, 32768, %s28, [#allocation3], 512, 512, 32
    $region13: #{decoder_forward.1} parent=1 // pred_fallthru
      _
    // Predicated region
    $region14: #{decoder_forward.1} parent=1 // pred_check
      _
    $region15: #{decoder_forward.1} parent=1 // pred_check_branch
      %35 = sbr.rel (0) target = $region17
    $region16: #{decoder_forward.1} parent=1 // pred_region
      _
    $region17: #{decoder_forward.1} parent=1 // pred_fallthru
      _
    // Predicated region
    $region18: #{decoder_forward.1} parent=1 // pred_check
      _
    $region19: #{decoder_forward.1} parent=1 // pred_check_branch
      %37 = sbr.rel (0) target = $region21
    $region20: #{decoder_forward.1} parent=1 // pred_region
      %s39 = ssub.s32 2048, 2048
      %40 = vsyncadd [#allocation5], %s39
      %s41 = sshll.u32 [#allocation4], 4
      %s42 = int_to_ptr.vmem [resolvable:$true] %s41
      %47 = dma.hbm_to_vmem [thread:$0]  %s4, 2048, %s42, [#allocation5], 128, 128, 8
    $region21: #{decoder_forward.1} parent=1 // pred_fallthru
      _
    // Predicated region
    $region22: #{decoder_forward.1} parent=1 // pred_check
      _
    $region23: #{decoder_forward.1} parent=1 // pred_check_branch
      %49 = sbr.rel (0) target = $region25
    $region24: #{decoder_forward.1} parent=1 // pred_region
      _
    $region25: #{decoder_forward.1} parent=1 // pred_fallthru
      _
    // Predicated region
    $region26: #{decoder_forward.1} parent=1 // pred_check
      _
    $region27: #{decoder_forward.1} parent=1 // pred_check_branch
      %51 = sbr.rel (0) target = $region29
    $region28: #{decoder_forward.1} parent=1 // pred_region
      _
    $region29: #{decoder_forward.1} parent=1 // pred_fallthru
      _
    // Predicated region
    $region30: #{decoder_forward.1} parent=1 // pred_check
      _
    $region31: #{decoder_forward.1} parent=1 // pred_check_branch
      %53 = sbr.rel (0) target = $region33
    $region32: #{decoder_forward.1} parent=1 // pred_region
      _
    $region33: #{decoder_forward.1} parent=1 // pred_fallthru
      _
    // Predicated region
    $region34: #{decoder_forward.1} parent=1 // pred_check
      _
    $region35: #{decoder_forward.1} parent=1 // pred_check_branch
      %55 = sbr.rel (0) target = $region37
    $region36: #{decoder_forward.1} parent=1 // pred_region
      %56 = dma.done [#allocation3], 32768
    $region37: #{decoder_forward.1} parent=1 // pred_fallthru
      _
    // Predicated region
    $region38: #{decoder_forward.1} parent=1 // pred_check
      _
    $region39: #{decoder_forward.1} parent=1 // pred_check_branch
      %58 = sbr.rel (0) target = $region41
    $region40: #{decoder_forward.1} parent=1 // pred_region
      %59 = dma.done [#allocation5], 2048
    $region41: #{decoder_forward.1} parent=1 // pred_fallthru
      _
    %v60 = vld [vmem:[%s0] sm:$0xff]
    %v61 = vlaneseq
    %v62 = vand.u32 %v61, 127
    %63 = vset.pattern.permute.xlu0 0
    %64 = vperm.xlu0 %63, %v60
    %v65 = vpop.permute.xlu0 %64
    %vm66 = vcmp.eq.s32.totalorder %v62, %v65
    %v67 = vsel %vm66, 1, 0
    %v68 = vcvt.s32.f32 %v67
    %v69 = vld [vmem:[%s1] sm:$0xff]
    %v70 = vld [vmem:[%s1 + $0x8] sm:$0xff]
    %vm71 = vcmask 130048
    %v73 = vsel %vm71, %v68, 0
    %75 = vmatprep.subr.mxu0 0.0
    %76 = vmatpush1.msra.mxu0 %v69
    %77 = vmatprep.subr.mxu0 0.0
    %78 = vmatpush1.msra.mxu0 %v70
    %79 = vmatprep.subr.mxu0 0.0
    %80 = vmatpush1.msra.mxu0 0.0
    %81 = vmatprep.subr.mxu0 0.0
    %82 = vmatpush1.msra.mxu0 0.0
    %83 = vmatprep.subr.mxu0 0.0
    %84 = vmatpush1.msra.mxu0 0.0
    %85 = vmatprep.subr.mxu0 0.0
    %86 = vmatpush1.msra.mxu0 0.0
    %87 = vmatprep.subr.mxu0 0.0
    %88 = vmatpush1.msra.mxu0 0.0
    %89 = vmatprep.subr.mxu0 0.0
    %90 = vmatpush1.msra.mxu0 0.0
    %91 = vmatprep.subr.mxu0 0.0
    %92 = vmatpush1.msra.mxu0 0.0
    %93 = vmatprep.subr.mxu0 0.0
    %94 = vmatpush1.msra.mxu0 0.0
    %95 = vmatprep.subr.mxu0 0.0
    %96 = vmatpush1.msra.mxu0 0.0
    %97 = vmatprep.subr.mxu0 0.0
    %98 = vmatpush1.msra.mxu0 0.0
    %99 = vmatprep.subr.mxu0 0.0
    %100 = vmatpush1.msra.mxu0 0.0
    %101 = vmatprep.subr.mxu0 0.0
    %102 = vmatpush1.msra.mxu0 0.0
    %103 = vmatprep.subr.mxu0 0.0
    %104 = vmatpush1.msra.mxu0 0.0
    %105 = vmatprep.subr.mxu0 0.0
    %106 = vmatpush1.msra.mxu0 0.0
    %107 = vmatprep.subr.mxu0 0.0
    %108 = vmatpush1.msra.mxu0 0.0
    %109 = vmatprep.subr.mxu0 0.0
    %110 = vmatpush1.msra.mxu0 0.0
    %111 = vmatprep.subr.mxu0 0.0
    %112 = vmatpush1.msra.mxu0 0.0
    %113 = vmatprep.subr.mxu0 0.0
    %114 = vmatpush1.msra.mxu0 0.0
    %115 = vmatprep.subr.mxu0 0.0
    %116 = vmatpush1.msra.mxu0 0.0
    %117 = vmatprep.subr.mxu0 0.0
    %118 = vmatpush1.msra.mxu0 0.0
    %119 = vmatprep.subr.mxu0 0.0
    %120 = vmatpush1.msra.mxu0 0.0
    %121 = vmatprep.subr.mxu0 0.0
    %122 = vmatpush1.msra.mxu0 0.0
    %123 = vmatprep.subr.mxu0 0.0
    %124 = vmatpush1.msra.mxu0 0.0
    %125 = vmatprep.subr.mxu0 0.0
    %126 = vmatpush1.msra.mxu0 0.0
    %127 = vmatprep.subr.mxu0 0.0
    %128 = vmatpush1.msra.mxu0 0.0
    %129 = vmatprep.subr.mxu0 0.0
    %130 = vmatpush1.msra.mxu0 0.0
    %131 = vmatprep.subr.mxu0 0.0
    %132 = vmatpush1.msra.mxu0 0.0
    %133 = vmatprep.subr.mxu0 0.0
    %134 = vmatpush1.msra.mxu0 0.0
    %135 = vmatprep.subr.mxu0 0.0
    %136 = vmatpush1.msra.mxu0 0.0
    %137 = vmatprep.subr.mxu0 0.0
    %138 = vmatpush1.msra.mxu0 0.0
    %139 = vmatprep.mubr.f32.mxu0 0.0
    %140 = vmatmul.mubr.f32.gmra.mrb[0].mxu0 %v73
    %v141 = vpop.f32.mrb[0].mxu0
    %v142 = vadd.f32 0.0, %v141
    %v143 = vpop.f32.mrb[0].mxu0
    %144 = vdwg.mxu0
    %v145 = vld [vmem:[%s6] sm:$0xff]
    %v146 = vld [vmem:[%s7] sm:$0xff]
    %v147 = vld [vmem:[#allocation2] sm:$0xff]
    %v148 = vld [vmem:[#allocation2 + $0x8] sm:$0xff]
    %v149 = vld [vmem:[#allocation2 + $0x10] sm:$0xff]
    %v150 = vld [vmem:[#allocation2 + $0x18] sm:$0xff]
    %v151 = vld [vmem:[#allocation2 + $0x20] sm:$0xff]
    %v152 = vld [vmem:[#allocation2 + $0x28] sm:$0xff]
    %v153 = vld [vmem:[#allocation2 + $0x30] sm:$0xff]
    %v154 = vld [vmem:[#allocation2 + $0x38] sm:$0xff]
    %v155 = vld [vmem:[#allocation2 + $0x40] sm:$0xff]
    %v156 = vld [vmem:[#allocation2 + $0x48] sm:$0xff]
    %v157 = vld [vmem:[#allocation2 + $0x50] sm:$0xff]
    %v158 = vld [vmem:[#allocation2 + $0x58] sm:$0xff]
    %v159 = vld [vmem:[#allocation2 + $0x60] sm:$0xff]
    %v160 = vld [vmem:[#allocation2 + $0x68] sm:$0xff]
    %v161 = vld [vmem:[#allocation2 + $0x70] sm:$0xff]
    %v162 = vld [vmem:[#allocation2 + $0x78] sm:$0xff]
    %v163 = vld [vmem:[#allocation2 + $0x80] sm:$0xff]
    %v164 = vld [vmem:[#allocation2 + $0x88] sm:$0xff]
    %v165 = vld [vmem:[#allocation2 + $0x90] sm:$0xff]
    %v166 = vld [vmem:[#allocation2 + $0x98] sm:$0xff]
    %v167 = vld [vmem:[#allocation2 + $0xa0] sm:$0xff]
    %v168 = vld [vmem:[#allocation2 + $0xa8] sm:$0xff]
    %v169 = vld [vmem:[#allocation2 + $0xb0] sm:$0xff]
    %v170 = vld [vmem:[#allocation2 + $0xb8] sm:$0xff]
    %v171 = vld [vmem:[#allocation2 + $0xc0] sm:$0xff]
    %v172 = vld [vmem:[#allocation2 + $0xc8] sm:$0xff]
    %v173 = vld [vmem:[#allocation2 + $0xd0] sm:$0xff]
    %v174 = vld [vmem:[#allocation2 + $0xd8] sm:$0xff]
    %v175 = vld [vmem:[#allocation2 + $0xe0] sm:$0xff]
    %v176 = vld [vmem:[#allocation2 + $0xe8] sm:$0xff]
    %v177 = vld [vmem:[#allocation2 + $0xf0] sm:$0xff]
    %v178 = vld [vmem:[#allocation2 + $0xf8] sm:$0xff]
    %v179 = vld [vmem:[#allocation2 + $0x100] sm:$0xff]
    %v180 = vld [vmem:[#allocation2 + $0x108] sm:$0xff]
    %v181 = vld [vmem:[#allocation2 + $0x110] sm:$0xff]
    %v182 = vld [vmem:[#allocation2 + $0x118] sm:$0xff]
    %v183 = vld [vmem:[#allocation2 + $0x120] sm:$0xff]
    %v184 = vld [vmem:[#allocation2 + $0x128] sm:$0xff]
    %v185 = vld [vmem:[#allocation2 + $0x130] sm:$0xff]
    %v186 = vld [vmem:[#allocation2 + $0x138] sm:$0xff]
    %v187 = vld [vmem:[#allocation2 + $0x140] sm:$0xff]
    %v188 = vld [vmem:[#allocation2 + $0x148] sm:$0xff]
    %v189 = vld [vmem:[#allocation2 + $0x150] sm:$0xff]
    %v190 = vld [vmem:[#allocation2 + $0x158] sm:$0xff]
    %v191 = vld [vmem:[#allocation2 + $0x160] sm:$0xff]
    %v192 = vld [vmem:[#allocation2 + $0x168] sm:$0xff]
    %v193 = vld [vmem:[#allocation2 + $0x170] sm:$0xff]
    %v194 = vld [vmem:[#allocation2 + $0x178] sm:$0xff]
    %v195 = vld [vmem:[#allocation2 + $0x180] sm:$0xff]
    %v196 = vld [vmem:[#allocation2 + $0x188] sm:$0xff]
    %v197 = vld [vmem:[#allocation2 + $0x190] sm:$0xff]
    %v198 = vld [vmem:[#allocation2 + $0x198] sm:$0xff]
    %v199 = vld [vmem:[#allocation2 + $0x1a0] sm:$0xff]
    %v200 = vld [vmem:[#allocation2 + $0x1a8] sm:$0xff]
    %v201 = vld [vmem:[#allocation2 + $0x1b0] sm:$0xff]
    %v202 = vld [vmem:[#allocation2 + $0x1b8] sm:$0xff]
    %v203 = vld [vmem:[#allocation2 + $0x1c0] sm:$0xff]
    %v204 = vld [vmem:[#allocation2 + $0x1c8] sm:$0xff]
    %v205 = vld [vmem:[#allocation2 + $0x1d0] sm:$0xff]
    %v206 = vld [vmem:[#allocation2 + $0x1d8] sm:$0xff]
    %v207 = vld [vmem:[#allocation2 + $0x1e0] sm:$0xff]
    %v208 = vld [vmem:[#allocation2 + $0x1e8] sm:$0xff]
    %v209 = vld [vmem:[#allocation2 + $0x1f0] sm:$0xff]
    %v210 = vld [vmem:[#allocation2 + $0x1f8] sm:$0xff]
    %v211 = vld [vmem:[#allocation2 + $0x200] sm:$0xff]
    %v212 = vld [vmem:[#allocation2 + $0x208] sm:$0xff]
    %v213 = vld [vmem:[#allocation2 + $0x210] sm:$0xff]
    %v214 = vld [vmem:[#allocation2 + $0x218] sm:$0xff]
    %v215 = vld [vmem:[#allocation2 + $0x220] sm:$0xff]
    %v216 = vld [vmem:[#allocation2 + $0x228] sm:$0xff]
    %v217 = vld [vmem:[#allocation2 + $0x230] sm:$0xff]
    %v218 = vld [vmem:[#allocation2 + $0x238] sm:$0xff]
    %v219 = vld [vmem:[#allocation2 + $0x240] sm:$0xff]
    %v220 = vld [vmem:[#allocation2 + $0x248] sm:$0xff]
    %v221 = vld [vmem:[#allocation2 + $0x250] sm:$0xff]
    %v222 = vld [vmem:[#allocation2 + $0x258] sm:$0xff]
    %v223 = vld [vmem:[#allocation2 + $0x260] sm:$0xff]
    %v224 = vld [vmem:[#allocation2 + $0x268] sm:$0xff]
    %v225 = vld [vmem:[#allocation2 + $0x270] sm:$0xff]
    %v226 = vld [vmem:[#allocation2 + $0x278] sm:$0xff]
    %v227 = vld [vmem:[#allocation2 + $0x280] sm:$0xff]
    %v228 = vld [vmem:[#allocation2 + $0x288] sm:$0xff]
    %v229 = vld [vmem:[#allocation2 + $0x290] sm:$0xff]
    %v230 = vld [vmem:[#allocation2 + $0x298] sm:$0xff]
    %v231 = vld [vmem:[#allocation2 + $0x2a0] sm:$0xff]
    %v232 = vld [vmem:[#allocation2 + $0x2a8] sm:$0xff]
    %v233 = vld [vmem:[#allocation2 + $0x2b0] sm:$0xff]
    %v234 = vld [vmem:[#allocation2 + $0x2b8] sm:$0xff]
    %v235 = vld [vmem:[#allocation2 + $0x2c0] sm:$0xff]
    %v236 = vld [vmem:[#allocation2 + $0x2c8] sm:$0xff]
    %v237 = vld [vmem:[#allocation2 + $0x2d0] sm:$0xff]
    %v238 = vld [vmem:[#allocation2 + $0x2d8] sm:$0xff]
    %v239 = vld [vmem:[#allocation2 + $0x2e0] sm:$0xff]
    %v240 = vld [vmem:[#allocation2 + $0x2e8] sm:$0xff]
    %v241 = vld [vmem:[#allocation2 + $0x2f0] sm:$0xff]
    %v242 = vld [vmem:[#allocation2 + $0x2f8] sm:$0xff]
    %v243 = vld [vmem:[#allocation2 + $0x300] sm:$0xff]
    %v244 = vld [vmem:[#allocation2 + $0x308] sm:$0xff]
    %v245 = vld [vmem:[#allocation2 + $0x310] sm:$0xff]
    %v246 = vld [vmem:[#allocation2 + $0x318] sm:$0xff]
    %v247 = vld [vmem:[#allocation2 + $0x320] sm:$0xff]
    %v248 = vld [vmem:[#allocation2 + $0x328] sm:$0xff]
    %v249 = vld [vmem:[#allocation2 + $0x330] sm:$0xff]
    %v250 = vld [vmem:[#allocation2 + $0x338] sm:$0xff]
    %v251 = vld [vmem:[#allocation2 + $0x340] sm:$0xff]
    %v252 = vld [vmem:[#allocation2 + $0x348] sm:$0xff]
    %v253 = vld [vmem:[#allocation2 + $0x350] sm:$0xff]
    %v254 = vld [vmem:[#allocation2 + $0x358] sm:$0xff]
    %v255 = vld [vmem:[#allocation2 + $0x360] sm:$0xff]
    %v256 = vld [vmem:[#allocation2 + $0x368] sm:$0xff]
    %v257 = vld [vmem:[#allocation2 + $0x370] sm:$0xff]
    %v258 = vld [vmem:[#allocation2 + $0x378] sm:$0xff]
    %v259 = vld [vmem:[#allocation2 + $0x380] sm:$0xff]
    %v260 = vld [vmem:[#allocation2 + $0x388] sm:$0xff]
    %v261 = vld [vmem:[#allocation2 + $0x390] sm:$0xff]
    %v262 = vld [vmem:[#allocation2 + $0x398] sm:$0xff]
    %v263 = vld [vmem:[#allocation2 + $0x3a0] sm:$0xff]
    %v264 = vld [vmem:[#allocation2 + $0x3a8] sm:$0xff]
    %v265 = vld [vmem:[#allocation2 + $0x3b0] sm:$0xff]
    %v266 = vld [vmem:[#allocation2 + $0x3b8] sm:$0xff]
    %v267 = vld [vmem:[#allocation2 + $0x3c0] sm:$0xff]
    %v268 = vld [vmem:[#allocation2 + $0x3c8] sm:$0xff]
    %v269 = vld [vmem:[#allocation2 + $0x3d0] sm:$0xff]
    %v270 = vld [vmem:[#allocation2 + $0x3d8] sm:$0xff]
    %v271 = vld [vmem:[#allocation2 + $0x3e0] sm:$0xff]
    %v272 = vld [vmem:[#allocation2 + $0x3e8] sm:$0xff]
    %v273 = vld [vmem:[#allocation2 + $0x3f0] sm:$0xff]
    %v274 = vld [vmem:[#allocation2 + $0x3f8] sm:$0xff]
    %v275 = vld [vmem:[%s3] sm:$0xf]
    %v277 = vlaneseq
    %v278 = vshrl.u32 %v277, 7
    %v279 = vsub.s32 0, %v278
    %v280 = vrot.slane %v275, %v279
    %v281 = vlaneseq
    %v282 = vshrl.u32 %v281, 7
    %v283 = vsub.s32 1, %v282
    %v284 = vrot.slane %v275, %v283
    %v285 = vlaneseq
    %v286 = vshrl.u32 %v285, 7
    %v287 = vsub.s32 2, %v286
    %v288 = vrot.slane %v275, %v287
    %v289 = vlaneseq
    %v290 = vshrl.u32 %v289, 7
    %v291 = vsub.s32 3, %v290
    %v292 = vrot.slane %v275, %v291
    %297 = vmatprep.subr.mxu0 %v148
    %298 = vmatpush1.msra.mxu0 %v147
    %299 = vmatprep.subr.mxu0 %v152
    %300 = vmatpush1.msra.mxu0 %v151
    %301 = vmatprep.subr.mxu0 %v156
    %302 = vmatpush1.msra.mxu0 %v155
    %303 = vmatprep.subr.mxu0 %v160
    %304 = vmatpush1.msra.mxu0 %v159
    %305 = vmatprep.subr.mxu0 %v164
    %306 = vmatpush1.msra.mxu0 %v163
    %307 = vmatprep.subr.mxu0 %v168
    %308 = vmatpush1.msra.mxu0 %v167
    %309 = vmatprep.subr.mxu0 %v172
    %310 = vmatpush1.msra.mxu0 %v171
    %311 = vmatprep.subr.mxu0 %v176
    %312 = vmatpush1.msra.mxu0 %v175
    %313 = vmatprep.subr.mxu0 %v180
    %314 = vmatpush1.msra.mxu0 %v179
    %315 = vmatprep.subr.mxu0 %v184
    %316 = vmatpush1.msra.mxu0 %v183
    %317 = vmatprep.subr.mxu0 %v188
    %318 = vmatpush1.msra.mxu0 %v187
    %319 = vmatprep.subr.mxu0 %v192
    %320 = vmatpush1.msra.mxu0 %v191
    %321 = vmatprep.subr.mxu0 %v196
    %322 = vmatpush1.msra.mxu0 %v195
    %323 = vmatprep.subr.mxu0 %v200
    %324 = vmatpush1.msra.mxu0 %v199
    %325 = vmatprep.subr.mxu0 %v204
    %326 = vmatpush1.msra.mxu0 %v203
    %327 = vmatprep.subr.mxu0 %v208
    %328 = vmatpush1.msra.mxu0 %v207
    %329 = vmatprep.subr.mxu0 %v212
    %330 = vmatpush1.msra.mxu0 %v211
    %331 = vmatprep.subr.mxu0 %v216
    %332 = vmatpush1.msra.mxu0 %v215
    %333 = vmatprep.subr.mxu0 %v220
    %334 = vmatpush1.msra.mxu0 %v219
    %335 = vmatprep.subr.mxu0 %v224
    %336 = vmatpush1.msra.mxu0 %v223
    %337 = vmatprep.subr.mxu0 %v228
    %338 = vmatpush1.msra.mxu0 %v227
    %339 = vmatprep.subr.mxu0 %v232
    %340 = vmatpush1.msra.mxu0 %v231
    %341 = vmatprep.subr.mxu0 %v236
    %342 = vmatpush1.msra.mxu0 %v235
    %343 = vmatprep.subr.mxu0 %v240
    %344 = vmatpush1.msra.mxu0 %v239
    %345 = vmatprep.subr.mxu0 %v244
    %346 = vmatpush1.msra.mxu0 %v243
    %347 = vmatprep.subr.mxu0 %v248
    %348 = vmatpush1.msra.mxu0 %v247
    %349 = vmatprep.subr.mxu0 %v252
    %350 = vmatpush1.msra.mxu0 %v251
    %351 = vmatprep.subr.mxu0 %v256
    %352 = vmatpush1.msra.mxu0 %v255
    %353 = vmatprep.subr.mxu0 %v260
    %354 = vmatpush1.msra.mxu0 %v259
    %355 = vmatprep.subr.mxu0 %v264
    %356 = vmatpush1.msra.mxu0 %v263
    %357 = vmatprep.subr.mxu0 %v268
    %358 = vmatpush1.msra.mxu0 %v267
    %359 = vmatprep.subr.mxu0 %v272
    %360 = vmatpush1.msra.mxu0 %v271
    %361 = vmatprep.mubr.f32.mxu0 %v145
    %362 = vmatmul.mubr.f32.gmra.mrb[0].mxu0 %v142
    %v363 = vpop.f32.mrb[0].mxu0
    %v364 = vadd.f32 %v280, %v363
    %v365 = vpop.f32.mrb[0].mxu0
    %v366 = vadd.f32 %v284, %v365
    %367 = vdwg.mxu0
    %368 = vmatprep.subr.mxu0 %v150
    %369 = vmatpush1.msra.mxu0 %v149
    %370 = vmatprep.subr.mxu0 %v154
    %371 = vmatpush1.msra.mxu0 %v153
    %372 = vmatprep.subr.mxu0 %v158
    %373 = vmatpush1.msra.mxu0 %v157
    %374 = vmatprep.subr.mxu0 %v162
    %375 = vmatpush1.msra.mxu0 %v161
    %376 = vmatprep.subr.mxu0 %v166
    %377 = vmatpush1.msra.mxu0 %v165
    %378 = vmatprep.subr.mxu0 %v170
    %379 = vmatpush1.msra.mxu0 %v169
    %380 = vmatprep.subr.mxu0 %v174
    %381 = vmatpush1.msra.mxu0 %v173
    %382 = vmatprep.subr.mxu0 %v178
    %383 = vmatpush1.msra.mxu0 %v177
    %384 = vmatprep.subr.mxu0 %v182
    %385 = vmatpush1.msra.mxu0 %v181
    %386 = vmatprep.subr.mxu0 %v186
    %387 = vmatpush1.msra.mxu0 %v185
    %388 = vmatprep.subr.mxu0 %v190
    %389 = vmatpush1.msra.mxu0 %v189
    %390 = vmatprep.subr.mxu0 %v194
    %391 = vmatpush1.msra.mxu0 %v193
    %392 = vmatprep.subr.mxu0 %v198
    %393 = vmatpush1.msra.mxu0 %v197
    %394 = vmatprep.subr.mxu0 %v202
    %395 = vmatpush1.msra.mxu0 %v201
    %396 = vmatprep.subr.mxu0 %v206
    %397 = vmatpush1.msra.mxu0 %v205
    %398 = vmatprep.subr.mxu0 %v210
    %399 = vmatpush1.msra.mxu0 %v209
    %400 = vmatprep.subr.mxu0 %v214
    %401 = vmatpush1.msra.mxu0 %v213
    %402 = vmatprep.subr.mxu0 %v218
    %403 = vmatpush1.msra.mxu0 %v217
    %404 = vmatprep.subr.mxu0 %v222
    %405 = vmatpush1.msra.mxu0 %v221
    %406 = vmatprep.subr.mxu0 %v226
    %407 = vmatpush1.msra.mxu0 %v225
    %408 = vmatprep.subr.mxu0 %v230
    %409 = vmatpush1.msra.mxu0 %v229
    %410 = vmatprep.subr.mxu0 %v234
    %411 = vmatpush1.msra.mxu0 %v233
    %412 = vmatprep.subr.mxu0 %v238
    %413 = vmatpush1.msra.mxu0 %v237
    %414 = vmatprep.subr.mxu0 %v242
    %415 = vmatpush1.msra.mxu0 %v241
    %416 = vmatprep.subr.mxu0 %v246
    %417 = vmatpush1.msra.mxu0 %v245
    %418 = vmatprep.subr.mxu0 %v250
    %419 = vmatpush1.msra.mxu0 %v249
    %420 = vmatprep.subr.mxu0 %v254
    %421 = vmatpush1.msra.mxu0 %v253
    %422 = vmatprep.subr.mxu0 %v258
    %423 = vmatpush1.msra.mxu0 %v257
    %424 = vmatprep.subr.mxu0 %v262
    %425 = vmatpush1.msra.mxu0 %v261
    %426 = vmatprep.subr.mxu0 %v266
    %427 = vmatpush1.msra.mxu0 %v265
    %428 = vmatprep.subr.mxu0 %v270
    %429 = vmatpush1.msra.mxu0 %v269
    %430 = vmatprep.subr.mxu0 %v274
    %431 = vmatpush1.msra.mxu0 %v273
    %432 = vmatprep.mubr.f32.mxu0 %v145
    %433 = vmatmul.mubr.f32.gmra.mrb[0].mxu0 %v142
    %v434 = vpop.f32.mrb[0].mxu0
    %v435 = vadd.f32 %v288, %v434
    %v436 = vpop.f32.mrb[0].mxu0
    %v437 = vadd.f32 %v292, %v436
    %438 = vdwg.mxu0
    %v439 = vxor.u32 %v364, 2147483648
    %v440 = vmul.f32 %v439, 1.442695
    %v441 = vpow.pop %v440
    %v442 = vadd.f32 %v441, 1.0
    %v443 = vrcp.pop %v442
    %v444 = vmul.f32 1.0, %v443
    %v445 = vxor.u32 %v366, 2147483648
    %v446 = vmul.f32 %v445, 1.442695
    %v447 = vpow.pop %v446
    %v448 = vadd.f32 %v447, 1.0
    %v449 = vrcp.pop %v448
    %v450 = vmul.f32 1.0, %v449
    %v451 = vtanh.pop %v435
    %v452 = vxor.u32 %v437, 2147483648
    %v453 = vmul.f32 %v452, 1.442695
    %v454 = vpow.pop %v453
    %v455 = vadd.f32 %v454, 1.0
    %v456 = vrcp.pop %v455
    %v457 = vmul.f32 1.0, %v456
    %v458 = vmul.f32 %v450, %v146
    %v459 = vmul.f32 %v444, %v451
    %v460 = vadd.f32 %v458, %v459
    %v461 = vtanh.pop %v460
    %v462 = vmul.f32 %v457, %v461
    %463 = vst [vmem:[%s9] sm:$0xff] %v462
    %464 = vst [vmem:[%s10] sm:$0xff] %v460
    %s465 = scalar_lea.vmem %s6, 8
    %v466 = vld [vmem:[%s465] sm:$0xff]
    %s467 = scalar_lea.vmem %s7, 8
    %v468 = vld [vmem:[%s467] sm:$0xff]
    %s469 = scalar_lea.vmem [#allocation2], 1024
    %v470 = vld [vmem:[%s469] sm:$0xff]
    %v471 = vld [vmem:[%s469 + $0x8] sm:$0xff]
    %v472 = vld [vmem:[%s469 + $0x10] sm:$0xff]
    %v473 = vld [vmem:[%s469 + $0x18] sm:$0xff]
    %v474 = vld [vmem:[%s469 + $0x20] sm:$0xff]
    %v475 = vld [vmem:[%s469 + $0x28] sm:$0xff]
    %v476 = vld [vmem:[%s469 + $0x30] sm:$0xff]
    %v477 = vld [vmem:[%s469 + $0x38] sm:$0xff]
    %v478 = vld [vmem:[%s469 + $0x40] sm:$0xff]
    %v479 = vld [vmem:[%s469 + $0x48] sm:$0xff]
    %v480 = vld [vmem:[%s469 + $0x50] sm:$0xff]
    %v481 = vld [vmem:[%s469 + $0x58] sm:$0xff]
    %v482 = vld [vmem:[%s469 + $0x60] sm:$0xff]
    %v483 = vld [vmem:[%s469 + $0x68] sm:$0xff]
    %v484 = vld [vmem:[%s469 + $0x70] sm:$0xff]
    %v485 = vld [vmem:[%s469 + $0x78] sm:$0xff]
    %v486 = vld [vmem:[%s469 + $0x80] sm:$0xff]
    %v487 = vld [vmem:[%s469 + $0x88] sm:$0xff]
    %v488 = vld [vmem:[%s469 + $0x90] sm:$0xff]
    %v489 = vld [vmem:[%s469 + $0x98] sm:$0xff]
    %v490 = vld [vmem:[%s469 + $0xa0] sm:$0xff]
    %v491 = vld [vmem:[%s469 + $0xa8] sm:$0xff]
    %v492 = vld [vmem:[%s469 + $0xb0] sm:$0xff]
    %v493 = vld [vmem:[%s469 + $0xb8] sm:$0xff]
    %v494 = vld [vmem:[%s469 + $0xc0] sm:$0xff]
    %v495 = vld [vmem:[%s469 + $0xc8] sm:$0xff]
    %v496 = vld [vmem:[%s469 + $0xd0] sm:$0xff]
    %v497 = vld [vmem:[%s469 + $0xd8] sm:$0xff]
    %v498 = vld [vmem:[%s469 + $0xe0] sm:$0xff]
    %v499 = vld [vmem:[%s469 + $0xe8] sm:$0xff]
    %v500 = vld [vmem:[%s469 + $0xf0] sm:$0xff]
    %v501 = vld [vmem:[%s469 + $0xf8] sm:$0xff]
    %v502 = vld [vmem:[%s469 + $0x100] sm:$0xff]
    %v503 = vld [vmem:[%s469 + $0x108] sm:$0xff]
    %v504 = vld [vmem:[%s469 + $0x110] sm:$0xff]
    %v505 = vld [vmem:[%s469 + $0x118] sm:$0xff]
    %v506 = vld [vmem:[%s469 + $0x120] sm:$0xff]
    %v507 = vld [vmem:[%s469 + $0x128] sm:$0xff]
    %v508 = vld [vmem:[%s469 + $0x130] sm:$0xff]
    %v509 = vld [vmem:[%s469 + $0x138] sm:$0xff]
    %v510 = vld [vmem:[%s469 + $0x140] sm:$0xff]
    %v511 = vld [vmem:[%s469 + $0x148] sm:$0xff]
    %v512 = vld [vmem:[%s469 + $0x150] sm:$0xff]
    %v513 = vld [vmem:[%s469 + $0x158] sm:$0xff]
    %v514 = vld [vmem:[%s469 + $0x160] sm:$0xff]
    %v515 = vld [vmem:[%s469 + $0x168] sm:$0xff]
    %v516 = vld [vmem:[%s469 + $0x170] sm:$0xff]
    %v517 = vld [vmem:[%s469 + $0x178] sm:$0xff]
    %v518 = vld [vmem:[%s469 + $0x180] sm:$0xff]
    %v519 = vld [vmem:[%s469 + $0x188] sm:$0xff]
    %v520 = vld [vmem:[%s469 + $0x190] sm:$0xff]
    %v521 = vld [vmem:[%s469 + $0x198] sm:$0xff]
    %v522 = vld [vmem:[%s469 + $0x1a0] sm:$0xff]
    %v523 = vld [vmem:[%s469 + $0x1a8] sm:$0xff]
    %v524 = vld [vmem:[%s469 + $0x1b0] sm:$0xff]
    %v525 = vld [vmem:[%s469 + $0x1b8] sm:$0xff]
    %v526 = vld [vmem:[%s469 + $0x1c0] sm:$0xff]
    %v527 = vld [vmem:[%s469 + $0x1c8] sm:$0xff]
    %v528 = vld [vmem:[%s469 + $0x1d0] sm:$0xff]
    %v529 = vld [vmem:[%s469 + $0x1d8] sm:$0xff]
    %v530 = vld [vmem:[%s469 + $0x1e0] sm:$0xff]
    %v531 = vld [vmem:[%s469 + $0x1e8] sm:$0xff]
    %v532 = vld [vmem:[%s469 + $0x1f0] sm:$0xff]
    %v533 = vld [vmem:[%s469 + $0x1f8] sm:$0xff]
    %v534 = vld [vmem:[%s469 + $0x200] sm:$0xff]
    %v535 = vld [vmem:[%s469 + $0x208] sm:$0xff]
    %v536 = vld [vmem:[%s469 + $0x210] sm:$0xff]
    %v537 = vld [vmem:[%s469 + $0x218] sm:$0xff]
    %v538 = vld [vmem:[%s469 + $0x220] sm:$0xff]
    %v539 = vld [vmem:[%s469 + $0x228] sm:$0xff]
    %v540 = vld [vmem:[%s469 + $0x230] sm:$0xff]
    %v541 = vld [vmem:[%s469 + $0x238] sm:$0xff]
    %v542 = vld [vmem:[%s469 + $0x240] sm:$0xff]
    %v543 = vld [vmem:[%s469 + $0x248] sm:$0xff]
    %v544 = vld [vmem:[%s469 + $0x250] sm:$0xff]
    %v545 = vld [vmem:[%s469 + $0x258] sm:$0xff]
    %v546 = vld [vmem:[%s469 + $0x260] sm:$0xff]
    %v547 = vld [vmem:[%s469 + $0x268] sm:$0xff]
    %v548 = vld [vmem:[%s469 + $0x270] sm:$0xff]
    %v549 = vld [vmem:[%s469 + $0x278] sm:$0xff]
    %v550 = vld [vmem:[%s469 + $0x280] sm:$0xff]
    %v551 = vld [vmem:[%s469 + $0x288] sm:$0xff]
    %v552 = vld [vmem:[%s469 + $0x290] sm:$0xff]
    %v553 = vld [vmem:[%s469 + $0x298] sm:$0xff]
    %v554 = vld [vmem:[%s469 + $0x2a0] sm:$0xff]
    %v555 = vld [vmem:[%s469 + $0x2a8] sm:$0xff]
    %v556 = vld [vmem:[%s469 + $0x2b0] sm:$0xff]
    %v557 = vld [vmem:[%s469 + $0x2b8] sm:$0xff]
    %v558 = vld [vmem:[%s469 + $0x2c0] sm:$0xff]
    %v559 = vld [vmem:[%s469 + $0x2c8] sm:$0xff]
    %v560 = vld [vmem:[%s469 + $0x2d0] sm:$0xff]
    %v561 = vld [vmem:[%s469 + $0x2d8] sm:$0xff]
    %v562 = vld [vmem:[%s469 + $0x2e0] sm:$0xff]
    %v563 = vld [vmem:[%s469 + $0x2e8] sm:$0xff]
    %v564 = vld [vmem:[%s469 + $0x2f0] sm:$0xff]
    %v565 = vld [vmem:[%s469 + $0x2f8] sm:$0xff]
    %v566 = vld [vmem:[%s469 + $0x300] sm:$0xff]
    %v567 = vld [vmem:[%s469 + $0x308] sm:$0xff]
    %v568 = vld [vmem:[%s469 + $0x310] sm:$0xff]
    %v569 = vld [vmem:[%s469 + $0x318] sm:$0xff]
    %v570 = vld [vmem:[%s469 + $0x320] sm:$0xff]
    %v571 = vld [vmem:[%s469 + $0x328] sm:$0xff]
    %v572 = vld [vmem:[%s469 + $0x330] sm:$0xff]
    %v573 = vld [vmem:[%s469 + $0x338] sm:$0xff]
    %v574 = vld [vmem:[%s469 + $0x340] sm:$0xff]
    %v575 = vld [vmem:[%s469 + $0x348] sm:$0xff]
    %v576 = vld [vmem:[%s469 + $0x350] sm:$0xff]
    %v577 = vld [vmem:[%s469 + $0x358] sm:$0xff]
    %v578 = vld [vmem:[%s469 + $0x360] sm:$0xff]
    %v579 = vld [vmem:[%s469 + $0x368] sm:$0xff]
    %v580 = vld [vmem:[%s469 + $0x370] sm:$0xff]
    %v581 = vld [vmem:[%s469 + $0x378] sm:$0xff]
    %v582 = vld [vmem:[%s469 + $0x380] sm:$0xff]
    %v583 = vld [vmem:[%s469 + $0x388] sm:$0xff]
    %v584 = vld [vmem:[%s469 + $0x390] sm:$0xff]
    %v585 = vld [vmem:[%s469 + $0x398] sm:$0xff]
    %v586 = vld [vmem:[%s469 + $0x3a0] sm:$0xff]
    %v587 = vld [vmem:[%s469 + $0x3a8] sm:$0xff]
    %v588 = vld [vmem:[%s469 + $0x3b0] sm:$0xff]
    %v589 = vld [vmem:[%s469 + $0x3b8] sm:$0xff]
    %v590 = vld [vmem:[%s469 + $0x3c0] sm:$0xff]
    %v591 = vld [vmem:[%s469 + $0x3c8] sm:$0xff]
    %v592 = vld [vmem:[%s469 + $0x3d0] sm:$0xff]
    %v593 = vld [vmem:[%s469 + $0x3d8] sm:$0xff]
    %v594 = vld [vmem:[%s469 + $0x3e0] sm:$0xff]
    %v595 = vld [vmem:[%s469 + $0x3e8] sm:$0xff]
    %v596 = vld [vmem:[%s469 + $0x3f0] sm:$0xff]
    %v597 = vld [vmem:[%s469 + $0x3f8] sm:$0xff]
    %s598 = scalar_lea.vmem %s3, 4
    %v599 = vld [vmem:[%s598] sm:$0xf]
    %v601 = vlaneseq
    %v602 = vshrl.u32 %v601, 7
    %v603 = vsub.s32 0, %v602
    %v604 = vrot.slane %v599, %v603
    %v605 = vlaneseq
    %v606 = vshrl.u32 %v605, 7
    %v607 = vsub.s32 1, %v606
    %v608 = vrot.slane %v599, %v607
    %v609 = vlaneseq
    %v610 = vshrl.u32 %v609, 7
    %v611 = vsub.s32 2, %v610
    %v612 = vrot.slane %v599, %v611
    %v613 = vlaneseq
    %v614 = vshrl.u32 %v613, 7
    %v615 = vsub.s32 3, %v614
    %v616 = vrot.slane %v599, %v615
    %621 = vmatprep.subr.mxu0 %v471
    %622 = vmatpush1.msra.mxu0 %v470
    %623 = vmatprep.subr.mxu0 %v475
    %624 = vmatpush1.msra.mxu0 %v474
    %625 = vmatprep.subr.mxu0 %v479
    %626 = vmatpush1.msra.mxu0 %v478
    %627 = vmatprep.subr.mxu0 %v483
    %628 = vmatpush1.msra.mxu0 %v482
    %629 = vmatprep.subr.mxu0 %v487
    %630 = vmatpush1.msra.mxu0 %v486
    %631 = vmatprep.subr.mxu0 %v491
    %632 = vmatpush1.msra.mxu0 %v490
    %633 = vmatprep.subr.mxu0 %v495
    %634 = vmatpush1.msra.mxu0 %v494
    %635 = vmatprep.subr.mxu0 %v499
    %636 = vmatpush1.msra.mxu0 %v498
    %637 = vmatprep.subr.mxu0 %v503
    %638 = vmatpush1.msra.mxu0 %v502
    %639 = vmatprep.subr.mxu0 %v507
    %640 = vmatpush1.msra.mxu0 %v506
    %641 = vmatprep.subr.mxu0 %v511
    %642 = vmatpush1.msra.mxu0 %v510
    %643 = vmatprep.subr.mxu0 %v515
    %644 = vmatpush1.msra.mxu0 %v514
    %645 = vmatprep.subr.mxu0 %v519
    %646 = vmatpush1.msra.mxu0 %v518
    %647 = vmatprep.subr.mxu0 %v523
    %648 = vmatpush1.msra.mxu0 %v522
    %649 = vmatprep.subr.mxu0 %v527
    %650 = vmatpush1.msra.mxu0 %v526
    %651 = vmatprep.subr.mxu0 %v531
    %652 = vmatpush1.msra.mxu0 %v530
    %653 = vmatprep.subr.mxu0 %v535
    %654 = vmatpush1.msra.mxu0 %v534
    %655 = vmatprep.subr.mxu0 %v539
    %656 = vmatpush1.msra.mxu0 %v538
    %657 = vmatprep.subr.mxu0 %v543
    %658 = vmatpush1.msra.mxu0 %v542
    %659 = vmatprep.subr.mxu0 %v547
    %660 = vmatpush1.msra.mxu0 %v546
    %661 = vmatprep.subr.mxu0 %v551
    %662 = vmatpush1.msra.mxu0 %v550
    %663 = vmatprep.subr.mxu0 %v555
    %664 = vmatpush1.msra.mxu0 %v554
    %665 = vmatprep.subr.mxu0 %v559
    %666 = vmatpush1.msra.mxu0 %v558
    %667 = vmatprep.subr.mxu0 %v563
    %668 = vmatpush1.msra.mxu0 %v562
    %669 = vmatprep.subr.mxu0 %v567
    %670 = vmatpush1.msra.mxu0 %v566
    %671 = vmatprep.subr.mxu0 %v571
    %672 = vmatpush1.msra.mxu0 %v570
    %673 = vmatprep.subr.mxu0 %v575
    %674 = vmatpush1.msra.mxu0 %v574
    %675 = vmatprep.subr.mxu0 %v579
    %676 = vmatpush1.msra.mxu0 %v578
    %677 = vmatprep.subr.mxu0 %v583
    %678 = vmatpush1.msra.mxu0 %v582
    %679 = vmatprep.subr.mxu0 %v587
    %680 = vmatpush1.msra.mxu0 %v586
    %681 = vmatprep.subr.mxu0 %v591
    %682 = vmatpush1.msra.mxu0 %v590
    %683 = vmatprep.subr.mxu0 %v595
    %684 = vmatpush1.msra.mxu0 %v594
    %685 = vmatprep.mubr.f32.mxu0 %v466
    %686 = vmatmul.mubr.f32.gmra.mrb[0].mxu0 %v462
    %v687 = vpop.f32.mrb[0].mxu0
    %v688 = vadd.f32 %v604, %v687
    %v689 = vpop.f32.mrb[0].mxu0
    %v690 = vadd.f32 %v608, %v689
    %691 = vdwg.mxu0
    %692 = vmatprep.subr.mxu0 %v473
    %693 = vmatpush1.msra.mxu0 %v472
    %694 = vmatprep.subr.mxu0 %v477
    %695 = vmatpush1.msra.mxu0 %v476
    %696 = vmatprep.subr.mxu0 %v481
    %697 = vmatpush1.msra.mxu0 %v480
    %698 = vmatprep.subr.mxu0 %v485
    %699 = vmatpush1.msra.mxu0 %v484
    %700 = vmatprep.subr.mxu0 %v489
    %701 = vmatpush1.msra.mxu0 %v488
    %702 = vmatprep.subr.mxu0 %v493
    %703 = vmatpush1.msra.mxu0 %v492
    %704 = vmatprep.subr.mxu0 %v497
    %705 = vmatpush1.msra.mxu0 %v496
    %706 = vmatprep.subr.mxu0 %v501
    %707 = vmatpush1.msra.mxu0 %v500
    %708 = vmatprep.subr.mxu0 %v505
    %709 = vmatpush1.msra.mxu0 %v504
    %710 = vmatprep.subr.mxu0 %v509
    %711 = vmatpush1.msra.mxu0 %v508
    %712 = vmatprep.subr.mxu0 %v513
    %713 = vmatpush1.msra.mxu0 %v512
    %714 = vmatprep.subr.mxu0 %v517
    %715 = vmatpush1.msra.mxu0 %v516
    %716 = vmatprep.subr.mxu0 %v521
    %717 = vmatpush1.msra.mxu0 %v520
    %718 = vmatprep.subr.mxu0 %v525
    %719 = vmatpush1.msra.mxu0 %v524
    %720 = vmatprep.subr.mxu0 %v529
    %721 = vmatpush1.msra.mxu0 %v528
    %722 = vmatprep.subr.mxu0 %v533
    %723 = vmatpush1.msra.mxu0 %v532
    %724 = vmatprep.subr.mxu0 %v537
    %725 = vmatpush1.msra.mxu0 %v536
    %726 = vmatprep.subr.mxu0 %v541
    %727 = vmatpush1.msra.mxu0 %v540
    %728 = vmatprep.subr.mxu0 %v545
    %729 = vmatpush1.msra.mxu0 %v544
    %730 = vmatprep.subr.mxu0 %v549
    %731 = vmatpush1.msra.mxu0 %v548
    %732 = vmatprep.subr.mxu0 %v553
    %733 = vmatpush1.msra.mxu0 %v552
    %734 = vmatprep.subr.mxu0 %v557
    %735 = vmatpush1.msra.mxu0 %v556
    %736 = vmatprep.subr.mxu0 %v561
    %737 = vmatpush1.msra.mxu0 %v560
    %738 = vmatprep.subr.mxu0 %v565
    %739 = vmatpush1.msra.mxu0 %v564
    %740 = vmatprep.subr.mxu0 %v569
    %741 = vmatpush1.msra.mxu0 %v568
    %742 = vmatprep.subr.mxu0 %v573
    %743 = vmatpush1.msra.mxu0 %v572
    %744 = vmatprep.subr.mxu0 %v577
    %745 = vmatpush1.msra.mxu0 %v576
    %746 = vmatprep.subr.mxu0 %v581
    %747 = vmatpush1.msra.mxu0 %v580
    %748 = vmatprep.subr.mxu0 %v585
    %749 = vmatpush1.msra.mxu0 %v584
    %750 = vmatprep.subr.mxu0 %v589
    %751 = vmatpush1.msra.mxu0 %v588
    %752 = vmatprep.subr.mxu0 %v593
    %753 = vmatpush1.msra.mxu0 %v592
    %754 = vmatprep.subr.mxu0 %v597
    %755 = vmatpush1.msra.mxu0 %v596
    %756 = vmatprep.mubr.f32.mxu0 %v466
    %757 = vmatmul.mubr.f32.gmra.mrb[0].mxu0 %v462
    %v758 = vpop.f32.mrb[0].mxu0
    %v759 = vadd.f32 %v612, %v758
    %v760 = vpop.f32.mrb[0].mxu0
    %v761 = vadd.f32 %v616, %v760
    %762 = vdwg.mxu0
    %v763 = vxor.u32 %v688, 2147483648
    %v764 = vmul.f32 %v763, 1.442695
    %v765 = vpow.pop %v764
    %v766 = vadd.f32 %v765, 1.0
    %v767 = vrcp.pop %v766
    %v768 = vmul.f32 1.0, %v767
    %v769 = vxor.u32 %v690, 2147483648
    %v770 = vmul.f32 %v769, 1.442695
    %v771 = vpow.pop %v770
    %v772 = vadd.f32 %v771, 1.0
    %v773 = vrcp.pop %v772
    %v774 = vmul.f32 1.0, %v773
    %v775 = vtanh.pop %v759
    %v776 = vxor.u32 %v761, 2147483648
    %v777 = vmul.f32 %v776, 1.442695
    %v778 = vpow.pop %v777
    %v779 = vadd.f32 %v778, 1.0
    %v780 = vrcp.pop %v779
    %v781 = vmul.f32 1.0, %v780
    %v782 = vmul.f32 %v774, %v468
    %v783 = vmul.f32 %v768, %v775
    %v784 = vadd.f32 %v782, %v783
    %v785 = vtanh.pop %v784
    %v786 = vmul.f32 %v781, %v785
    %s787 = scalar_lea.vmem %s9, 8
    %788 = vst [vmem:[%s787] sm:$0xff] %v786
    %s789 = scalar_lea.vmem %s10, 8
    %790 = vst [vmem:[%s789] sm:$0xff] %v784
    %v791 = vld [vmem:[#allocation4] sm:$0xff]
    %v792 = vld [vmem:[#allocation4 + $0x8] sm:$0xff]
    %v793 = vld [vmem:[#allocation4 + $0x10] sm:$0xff]
    %v794 = vld [vmem:[#allocation4 + $0x18] sm:$0xff]
    %v795 = vld [vmem:[#allocation4 + $0x20] sm:$0xff]
    %v796 = vld [vmem:[#allocation4 + $0x28] sm:$0xff]
    %v797 = vld [vmem:[#allocation4 + $0x30] sm:$0xff]
    %v798 = vld [vmem:[#allocation4 + $0x38] sm:$0xff]
    %v799 = vld [vmem:[#allocation4 + $0x40] sm:$0xff]
    %v800 = vld [vmem:[#allocation4 + $0x48] sm:$0xff]
    %v801 = vld [vmem:[#allocation4 + $0x50] sm:$0xff]
    %v802 = vld [vmem:[#allocation4 + $0x58] sm:$0xff]
    %v803 = vld [vmem:[#allocation4 + $0x60] sm:$0xff]
    %v804 = vld [vmem:[#allocation4 + $0x68] sm:$0xff]
    %v805 = vld [vmem:[#allocation4 + $0x70] sm:$0xff]
    %v806 = vld [vmem:[#allocation4 + $0x78] sm:$0xff]
    %v807 = vld [vmem:[%s5] sm:$0x1]
    %v809 = vlaneseq
    %v810 = vshrl.u32 %v809, 7
    %v811 = vsub.s32 0, %v810
    %v812 = vrot.slane %v807, %v811
    %814 = vmatprep.subr.mxu0 0.0
    %815 = vmatpush1.msra.mxu0 %v791
    %816 = vmatprep.subr.mxu0 0.0
    %817 = vmatpush1.msra.mxu0 %v792
    %818 = vmatprep.subr.mxu0 0.0
    %819 = vmatpush1.msra.mxu0 %v793
    %820 = vmatprep.subr.mxu0 0.0
    %821 = vmatpush1.msra.mxu0 %v794
    %822 = vmatprep.subr.mxu0 0.0
    %823 = vmatpush1.msra.mxu0 %v795
    %824 = vmatprep.subr.mxu0 0.0
    %825 = vmatpush1.msra.mxu0 %v796
    %826 = vmatprep.subr.mxu0 0.0
    %827 = vmatpush1.msra.mxu0 %v797
    %828 = vmatprep.subr.mxu0 0.0
    %829 = vmatpush1.msra.mxu0 %v798
    %830 = vmatprep.subr.mxu0 0.0
    %831 = vmatpush1.msra.mxu0 %v799
    %832 = vmatprep.subr.mxu0 0.0
    %833 = vmatpush1.msra.mxu0 %v800
    %834 = vmatprep.subr.mxu0 0.0
    %835 = vmatpush1.msra.mxu0 %v801
    %836 = vmatprep.subr.mxu0 0.0
    %837 = vmatpush1.msra.mxu0 %v802
    %838 = vmatprep.subr.mxu0 0.0
    %839 = vmatpush1.msra.mxu0 %v803
    %840 = vmatprep.subr.mxu0 0.0
    %841 = vmatpush1.msra.mxu0 %v804
    %842 = vmatprep.subr.mxu0 0.0
    %843 = vmatpush1.msra.mxu0 %v805
    %844 = vmatprep.subr.mxu0 0.0
    %845 = vmatpush1.msra.mxu0 %v806
    %846 = vmatprep.subr.mxu0 0.0
    %847 = vmatpush1.msra.mxu0 0.0
    %848 = vmatprep.subr.mxu0 0.0
    %849 = vmatpush1.msra.mxu0 0.0
    %850 = vmatprep.subr.mxu0 0.0
    %851 = vmatpush1.msra.mxu0 0.0
    %852 = vmatprep.subr.mxu0 0.0
    %853 = vmatpush1.msra.mxu0 0.0
    %854 = vmatprep.subr.mxu0 0.0
    %855 = vmatpush1.msra.mxu0 0.0
    %856 = vmatprep.subr.mxu0 0.0
    %857 = vmatpush1.msra.mxu0 0.0
    %858 = vmatprep.subr.mxu0 0.0
    %859 = vmatpush1.msra.mxu0 0.0
    %860 = vmatprep.subr.mxu0 0.0
    %861 = vmatpush1.msra.mxu0 0.0
    %862 = vmatprep.subr.mxu0 0.0
    %863 = vmatpush1.msra.mxu0 0.0
    %864 = vmatprep.subr.mxu0 0.0
    %865 = vmatpush1.msra.mxu0 0.0
    %866 = vmatprep.subr.mxu0 0.0
    %867 = vmatpush1.msra.mxu0 0.0
    %868 = vmatprep.subr.mxu0 0.0
    %869 = vmatpush1.msra.mxu0 0.0
    %870 = vmatprep.subr.mxu0 0.0
    %871 = vmatpush1.msra.mxu0 0.0
    %872 = vmatprep.subr.mxu0 0.0
    %873 = vmatpush1.msra.mxu0 0.0
    %874 = vmatprep.subr.mxu0 0.0
    %875 = vmatpush1.msra.mxu0 0.0
    %876 = vmatprep.subr.mxu0 0.0
    %877 = vmatpush1.msra.mxu0 0.0
    %878 = vmatprep.mubr.f32.mxu0 0.0
    %879 = vmatmul.mubr.f32.gmra.mrb[0].mxu0 %v786
    %v880 = vpop.f32.mrb[0].mxu0
    %v881 = vadd.f32 %v812, %v880
    %v882 = vpop.f32.mrb[0].mxu0
    %883 = vdwg.mxu0
    %884 = vst [vmem:[%s8] sm:$0xff] %v881
    // Predicated region
    $region42: #{decoder_forward.1} parent=1 // pred_check
      _
    $region43: #{decoder_forward.1} parent=1 // pred_check_branch
      %886 = sbr.rel (0) target = $region45
    $region44: #{decoder_forward.1} parent=1 // pred_region
      _
    $region45: #{decoder_forward.1} parent=1 // pred_fallthru
      _
    // Predicated region
    $region46: #{decoder_forward.1} parent=1 // pred_check
      _
    $region47: #{decoder_forward.1} parent=1 // pred_check_branch
      %888 = sbr.rel (0) target = $region49
    $region48: #{decoder_forward.1} parent=1 // pred_region
      _
    $region49: #{decoder_forward.1} parent=1 // pred_fallthru
      _
    // Predicated region
    $region50: #{decoder_forward.1} parent=1 // pred_check
      _
    $region51: #{decoder_forward.1} parent=1 // pred_check_branch
      %890 = sbr.rel (0) target = $region53
    $region52: #{decoder_forward.1} parent=1 // pred_region
      _
    $region53: #{decoder_forward.1} parent=1 // pred_fallthru
      _
    // Predicated region
    $region54: #{decoder_forward.1} parent=1 // pred_check
      _
    $region55: #{decoder_forward.1} parent=1 // pred_check_branch
      %892 = sbr.rel (0) target = $region57
    $region56: #{decoder_forward.1} parent=1 // pred_region
      _
    $region57: #{decoder_forward.1} parent=1 // pred_fallthru
      _
    // Predicated region
    $region58: #{decoder_forward.1} parent=1 // pred_check
      _
    $region59: #{decoder_forward.1} parent=1 // pred_check_branch
      %894 = sbr.rel (0) target = $region61
    $region60: #{decoder_forward.1} parent=1 // pred_region
      _
    $region61: #{decoder_forward.1} parent=1 // pred_fallthru
      _
    // Predicated region
    $region62: #{decoder_forward.1} parent=1 // pred_check
      _
    $region63: #{decoder_forward.1} parent=1 // pred_check_branch
      %896 = sbr.rel (0) target = $region65
    $region64: #{decoder_forward.1} parent=1 // pred_region
      _
    $region65: #{decoder_forward.1} parent=1 // pred_fallthru
      _
    %897 = vsyncpa [#allocation3], 1
    %898 = vsyncpa [#allocation5], 1

</llo_original>
